<compile_context>
chip_gen: v5e
topology: v5e:2x2
jax: 0.10.0
libtpu: 0.0.40
codegen_flags: <defaults>
</compile_context>

<pallas_src>
import numpy as np
import jax
import jax.numpy as jnp
from jax.experimental import pallas as pl
from jax.experimental.pallas import tpu as pltpu


def _inside_loss_kernel(o_ref, t_ref, m_ref, out_ref, acc_ref):
    """One (TR, 128) lane-dense tile of the flattened volume for one batch item.

    Accumulates sum((o - t)^2 * interior_mask) over the tile axis into a (1,1)
    VMEM scratch; writes the per-batch partial sum on the last tile.
    """
    t_id = pl.program_id(1)

    @pl.when(t_id == 0)
    def _():
        acc_ref[...] = jnp.zeros_like(acc_ref)

    d = o_ref[0].astype(jnp.float32) - t_ref[0].astype(jnp.float32)
    acc_ref[...] += jnp.sum(d * d * m_ref[...], keepdims=True)

    @pl.when(t_id == pl.num_programs(1) - 1)
    def _():
        out_ref[0] = acc_ref[...]


class InsideLossPallas:
    """JAX/Pallas port of InsideLoss (forward pass)."""

    LANES = 128
    SUBLANES = 8
    MAX_TILE_ROWS = 512  # 512*128*4B = 256 KiB per input block

    def __init__(self, cfg, inside_weight):
        self.nnx = int(cfg["globals"]["nnx"])
        self.nny = int(cfg["globals"]["nny"])
        self.nnz = int(cfg["globals"]["nnz"])
        self.weight = float(inside_weight)

        V = self.nnx * self.nny * self.nnz
        tile_elems = self.SUBLANES * self.LANES  # 1024
        V_pad = ((V + tile_elems - 1) // tile_elems) * tile_elems
        self.V = V
        self.V_pad = V_pad
        self.rows = V_pad // self.LANES          # multiple of 8

        # Static interior (1:-1 on every spatial axis) mask, lane-dense layout.
        ii, jj, kk = np.meshgrid(
            np.arange(self.nnx), np.arange(self.nny), np.arange(self.nnz),
            indexing="ij",
        )
        interior = ((ii >= 1) & (ii <= self.nnx - 2) &
                    (jj >= 1) & (jj <= self.nny - 2) &
                    (kk >= 1) & (kk <= self.nnz - 2))
        mask_flat = np.zeros(V_pad, np.float32)
        mask_flat[:V] = interior.reshape(-1).astype(np.float32)
        self.mask = jnp.asarray(mask_flat.reshape(self.rows, self.LANES))
        self.n_interior = int(interior.sum())

        # Largest row-tile that divides the padded row count, capped for VMEM.
        tr = self.SUBLANES
        for cand in range(min(self.rows, self.MAX_TILE_ROWS),
                          self.SUBLANES - 1, -self.SUBLANES):
            if self.rows % cand == 0:
                tr = cand
                break
        self.tile_rows = tr
        self.n_tiles = self.rows // tr

    def __call__(self, output, target):
        B = output.shape[0]
        o = output[:, 0].reshape(B, -1)
        t = target[:, 0].reshape(B, -1)
        if self.V_pad != self.V:
            pad = self.V_pad - self.V
            o = jnp.pad(o, ((0, 0), (0, pad)))
            t = jnp.pad(t, ((0, 0), (0, pad)))
        o3 = o.reshape(B, self.rows, self.LANES)
        t3 = t.reshape(B, self.rows, self.LANES)

        TR = self.tile_rows
        L = self.LANES

        partial = pl.pallas_call(
            _inside_loss_kernel,
            out_shape=jax.ShapeDtypeStruct((B, 1, 1), jnp.float32),
            grid_spec=pltpu.PrefetchScalarGridSpec(
                num_scalar_prefetch=0,
                grid=(B, self.n_tiles),
                in_specs=[
                    pl.BlockSpec((1, TR, L), lambda b, t: (b, t, 0)),
                    pl.BlockSpec((1, TR, L), lambda b, t: (b, t, 0)),
                    pl.BlockSpec((TR, L), lambda b, t: (t, 0)),  # mask reused per batch
                ],
                out_specs=pl.BlockSpec((1, 1, 1), lambda b, t: (b, 0, 0)),
                scratch_shapes=[pltpu.VMEM((1, 1), jnp.float32)],
            ),
            compiler_params=pltpu.CompilerParams(
                dimension_semantics=("parallel", "arbitrary")),
        )(o3, t3, self.mask)

        denom = float(B * self.n_interior)
        return (jnp.sum(partial) / denom) * self.weight


def reference_inside_loss(output, target, weight):
    """Plain-numpy replica of the PyTorch forward (float64)."""
    o = output[:, 0, 1:-1, 1:-1, 1:-1].astype(np.float64)
    t = target[:, 0, 1:-1, 1:-1, 1:-1].astype(np.float64)
    return float(np.mean((o - t) ** 2) * weight)


if __name__ == "__main__":
    B = 2
    nnx = nny = nnz = 16
    inside_weight = 0.7
    cfg = {"globals": {"nnx": nnx, "nny": nny, "nnz": nnz}}

    key = jax.random.PRNGKey(0)
    k1, k2 = jax.random.split(key)
    output = jax.random.normal(k1, (B, 1, nnx, nny, nnz), dtype=jnp.float32)
    target = jax.random.normal(k2, (B, 1, nnx, nny, nnz), dtype=jnp.float32)

    loss_mod = InsideLossPallas(cfg, inside_weight)
    loss = jax.block_until_ready(loss_mod(output, target))

    ref = reference_inside_loss(np.asarray(output), np.asarray(target), inside_weight)
    assert np.allclose(float(loss), ref, rtol=1e-5, atol=1e-7), (float(loss), ref)
    print("KERNEL_OK")
</pallas_src>

<mosaic_0001>
module attributes {stable_mosaic.version = 11 : i64} {
  func.func @_inside_loss_kernel(%arg0: i32, %arg1: i32, %arg2: memref<1x32x128xf32, #tpu.memory_space<vmem>>, %arg3: memref<1x32x128xf32, #tpu.memory_space<vmem>>, %arg4: memref<32x128xf32, #tpu.memory_space<vmem>>, %arg5: memref<1x1x1xf32, #tpu.memory_space<vmem>>, %arg6: memref<1x1xf32, #tpu.memory_space<vmem>>) attributes {dimension_semantics = [#tpu.dimension_semantics<parallel>, #tpu.dimension_semantics<arbitrary>], iteration_bounds = array<i64: 2, 1>, scalar_prefetch = 0 : i64, scratch_operands = 1 : i64, tpu.core_type = #tpu.core_type<tc>, window_params = [{transform_indices = @transform_0, window_bounds = array<i64: 1, 32, 128>}, {transform_indices = @transform_1, window_bounds = array<i64: 1, 32, 128>}, {transform_indices = @transform_2, window_bounds = array<i64: 32, 128>}, {transform_indices = @transform_3, window_bounds = array<i64: 1, 1, 1>}]} {
    %c0_i32 = arith.constant 0 : i32
    %0 = arith.cmpi eq, %arg1, %c0_i32 : i32
    %1 = arith.extui %0 : i1 to i32
    %c0_i32_0 = arith.constant 0 : i32
    %2 = arith.cmpi ne, %1, %c0_i32_0 : i32
    scf.if %2 {
      %cst_14 = arith.constant 0.000000e+00 : f32
      %22 = vector.broadcast %cst_14 : f32 to vector<1x1xf32>
      %c0_15 = arith.constant 0 : index
      %c0_16 = arith.constant 0 : index
      %23 = vector.load %arg6[%c0_15, %c0_16] : memref<1x1xf32, #tpu.memory_space<vmem>>, vector<1x1xf32>
      tpu.vector_store %arg6[%c0_15, %c0_16], %22 {strides = array<i32>} : memref<1x1xf32, #tpu.memory_space<vmem>>, vector<1x1xf32>,
    } else {
    }
    %c0 = arith.constant 0 : index
    %c0_1 = arith.constant 0 : index
    %c0_2 = arith.constant 0 : index
    %3 = vector.load %arg2[%c0, %c0_1, %c0_2] : memref<1x32x128xf32, #tpu.memory_space<vmem>>, vector<1x32x128xf32>
    %4 = vector.shape_cast %3 : vector<1x32x128xf32> to vector<32x128xf32>
    %c0_3 = arith.constant 0 : index
    %c0_4 = arith.constant 0 : index
    %c0_5 = arith.constant 0 : index
    %5 = vector.load %arg3[%c0_3, %c0_4, %c0_5] : memref<1x32x128xf32, #tpu.memory_space<vmem>>, vector<1x32x128xf32>
    %6 = vector.shape_cast %5 : vector<1x32x128xf32> to vector<32x128xf32>
    %7 = arith.subf %4, %6 : vector<32x128xf32>
    %c0_6 = arith.constant 0 : index
    %c0_7 = arith.constant 0 : index
    %8 = vector.load %arg6[%c0_6, %c0_7] : memref<1x1xf32, #tpu.memory_space<vmem>>, vector<1x1xf32>
    %9 = arith.mulf %7, %7 : vector<32x128xf32>
    %c0_8 = arith.constant 0 : index
    %c0_9 = arith.constant 0 : index
    %10 = vector.load %arg4[%c0_8, %c0_9] : memref<32x128xf32, #tpu.memory_space<vmem>>, vector<32x128xf32>
    %11 = arith.mulf %9, %10 : vector<32x128xf32>
    %12 = vector.shape_cast %11 : vector<32x128xf32> to vector<1x32x128xf32>
    %cst = arith.constant dense<0.000000e+00> : vector<1xf32>
    %13 = vector.multi_reduction <add>, %12, %cst [1, 2] : vector<1x32x128xf32> to vector<1xf32>
    %14 = vector.shape_cast %13 : vector<1xf32> to vector<1x1x1xf32>
    %15 = vector.extract %14[0, 0, 0] : f32 from vector<1x1x1xf32>
    %16 = vector.broadcast %15 : f32 to vector<1x1xf32>
    %17 = arith.addf %8, %16 : vector<1x1xf32>
    %c0_10 = arith.constant 0 : index
    %c0_11 = arith.constant 0 : index
    %18 = vector.load %arg6[%c0_10, %c0_11] : memref<1x1xf32, #tpu.memory_space<vmem>>, vector<1x1xf32>
    tpu.vector_store %arg6[%c0_10, %c0_11], %17 {strides = array<i32>} : memref<1x1xf32, #tpu.memory_space<vmem>>, vector<1x1xf32>,
    %c0_i32_12 = arith.constant 0 : i32
    %19 = arith.cmpi eq, %arg1, %c0_i32_12 : i32
    %20 = arith.extui %19 : i1 to i32
    %c0_i32_13 = arith.constant 0 : i32
    %21 = arith.cmpi ne, %20, %c0_i32_13 : i32
    scf.if %21 {
      %c0_14 = arith.constant 0 : index
      %c0_15 = arith.constant 0 : index
      %22 = vector.load %arg6[%c0_14, %c0_15] : memref<1x1xf32, #tpu.memory_space<vmem>>, vector<1x1xf32>
      %c0_16 = arith.constant 0 : index
      %c0_17 = arith.constant 0 : index
      %c0_18 = arith.constant 0 : index
      %23 = vector.load %arg5[%c0_16, %c0_17, %c0_18] : memref<1x1x1xf32, #tpu.memory_space<vmem>>, vector<1x1x1xf32>
      %24 = vector.shape_cast %23 : vector<1x1x1xf32> to vector<1x1xf32>
      %25 = vector.shape_cast %22 : vector<1x1xf32> to vector<1x1x1xf32>
      tpu.vector_store %arg5[%c0_16, %c0_17, %c0_18], %25 {strides = array<i32>} : memref<1x1x1xf32, #tpu.memory_space<vmem>>, vector<1x1x1xf32>,
    } else {
    }
    return
  }
  func.func @transform_0(%arg0: i32, %arg1: i32) -> (i32, i32, i32) {
    %c0_i32 = arith.constant 0 : i32
    %c0_i32_0 = arith.constant 0 : i32
    return %arg0, %arg1, %c0_i32 : i32, i32, i32
  }
  func.func @transform_1(%arg0: i32, %arg1: i32) -> (i32, i32, i32) {
    %c0_i32 = arith.constant 0 : i32
    %c0_i32_0 = arith.constant 0 : i32
    return %arg0, %arg1, %c0_i32 : i32, i32, i32
  }
  func.func @transform_2(%arg0: i32, %arg1: i32) -> (i32, i32) {
    %c0_i32 = arith.constant 0 : i32
    %c0_i32_0 = arith.constant 0 : i32
    return %arg1, %c0_i32 : i32, i32
  }
  func.func @transform_3(%arg0: i32, %arg1: i32) -> (i32, i32, i32) {
    %c0_i32 = arith.constant 0 : i32
    %c0_i32_0 = arith.constant 0 : i32
    %c0_i32_1 = arith.constant 0 : i32
    return %arg0, %c0_i32, %c0_i32_0 : i32, i32, i32
  }
}

</mosaic_0001>

<llo_original>
// kernel: tpu_custom_call.1
$region0: #{tpu_custom_call.1}
  #allocation0 [shape = 'u32[]', space=smem, size = 0x4, offset = 0x4, fixed_abs, tag = 'smem constant byte address 0x4 - core index']
  #allocation1 [shape = 'u32[72,128]{1,0:T(1,128)}', space=vmem, size = 0x9000, scoped, tag = 'internal scratch']
  #allocation2 [shape = 'f32[1,1]{1,0:T(1,128)}', space=vmem, size = 0x200, scoped, tag = 'scratch operand']
  %s0 = inlined_call_operand.hbm [shape: f32[2,32,128], index: 0, kind: input, shape index: {}]
  %s1 = inlined_call_operand.hbm [shape: f32[2,32,128], index: 1, kind: input, shape index: {}]
  %s2 = inlined_call_operand.hbm [shape: f32[32,128], index: 2, kind: input, shape index: {}]
  %s3 = inlined_call_operand.vmem [shape: f32[2,1,1], index: 3, kind: output, shape index: {}]
  %s4 = sld [smem:[#allocation0]]
  $region65: #{tpu_custom_call.1} parent=0
    _
  %s6 = ssub.s32 1, %s4
  %s7 = scalar_select 0, %s6, %s4
  $region1: #{tpu_custom_call.1} parent=0
    #allocation3 [shape = 'u8[32768]{0}', space=vmem, size = 0x8000, scoped, tag = 'input window, operand 0']
    #allocation4 [shape = 's32[2]{0}', space=sflag, size = 0x8, scoped, tag = 'scoped memory for tpu_custom_call.1']
    #allocation5 [shape = 'u8[32768]{0}', space=vmem, size = 0x8000, scoped, tag = 'input window, operand 1']
    #allocation6 [shape = 's32[2]{0}', space=sflag, size = 0x8, scoped, tag = 'scoped memory for tpu_custom_call.1']
    #allocation7 [shape = 'u8[16384]{0}', space=vmem, size = 0x4000, scoped, tag = 'input window, operand 2, single buffered']
    %8 = vsyncpa [#allocation4], 0
    %s9 = scalar_lea.sflag [#allocation4], 1
    %10 = vsyncpa %s9, 0
    %11 = vsyncpa [#allocation6], 0
    %s12 = scalar_lea.sflag [#allocation6], 1
    %13 = vsyncpa %s12, 0
    loop: start=0, step=1, limit=4
    $region2: #{tpu_custom_call.1} parent=1 // loop_pre_header
      _
    $region3: #{tpu_custom_call.1} parent=1 // loop_header
      %s15 = sphi 0, %s19
      %p16 = scmp.ge.s32.totalorder %s15, 4
      %s22 = sphi 0, %s34
      %s23 = sphi 0, %s30
      %s24 = sphi 0, %s22
      %s25 = sphi 0, %s23
      %s26 = sphi 0, %s24
      %s27 = sphi 0, %s25
      %s39 = sphi 0, %s41
      %s42 = sphi 0, %s39
      %s43 = sphi 0, %s42
      %s59 = sphi 0, %s43
      %s67 = sphi 0, %s69
      %s70 = sphi 0, %s67
      %s71 = sphi 0, %s70
      %s87 = sphi 0, %s71
      %s93 = sphi 0, %s95
      %s96 = sphi 0, %s93
      %s97 = sphi 0, %s96
      %s113 = sphi 0, %s97
      %s119 = sphi 0, %s121
      %s122 = sphi 0, %s119
      %s123 = sphi 0, %s122
      %s139 = sphi 0, %s123
    $region4: #{tpu_custom_call.1} parent=1 // loop_header_branch
      %18 = sbr.rel (%p16) target = $region8
    $region5: #{tpu_custom_call.1} parent=1 // loop_body
      %s20 = ssub.s32 %s15, 1
      %s21 = ssub.s32 %s15, 2
      %s28 = sadd.s32 1, %s23
      %p29 = scmp.ge.s32.totalorder %s28, 1
      %s30 = scalar_select %p29, 0, %s28
      %s31 = sadd.s32 1, %s22
      %s32 = scalar_select %p29, %s31, %s22
      %p33 = scmp.ge.s32.totalorder %s32, 2
      %s34 = scalar_select %p33, 0, %s32
      %s35 = ssub.s32 %s22, %s34
      %s36 = ssub.s32 %s23, %s30
      %s37 = sor.u32 %s35, %s36
      %p38 = scmp.eq.s32.totalorder %s37, 0
      %s40 = sadd.s32 %s39, 1
      %s41 = scalar_select %p38, %s39, %s40
      %p44 = pneg %p38
      %p45 = scmp.eq.s32.totalorder %s15, 1
      %p46 = por %p44, %p45
      %p47 = scmp.ne.s32.totalorder %s39, %s42
      %p48 = scmp.eq.s32.totalorder %s15, 0
      %p49 = por %p47, %p48
      %p50 = scmp.ne.s32.totalorder %s39, %s42
      %p51 = scmp.eq.s32.totalorder %s20, 1
      %p52 = por %p50, %p51
      %p53 = scmp.ne.s32.totalorder %s42, %s43
      %p54 = scmp.eq.s32.totalorder %s20, 0
      %p55 = por %p53, %p54
      %p56 = scmp.ne.s32.totalorder %s42, %s43
      %p57 = scmp.eq.s32.totalorder %s21, 1
      %p58 = por %p56, %p57
      %p60 = scmp.ne.s32.totalorder %s43, %s59
      %p61 = scmp.eq.s32.totalorder %s21, 0
      %p62 = por %p60, %p61
      %s63 = ssub.s32 %s22, %s34
      %s64 = ssub.s32 %s23, %s30
      %s65 = sor.u32 %s63, %s64
      %p66 = scmp.eq.s32.totalorder %s65, 0
      %s68 = sadd.s32 %s67, 1
      %s69 = scalar_select %p66, %s67, %s68
      %p72 = pneg %p66
      %p73 = scmp.eq.s32.totalorder %s15, 1
      %p74 = por %p72, %p73
      %p75 = scmp.ne.s32.totalorder %s67, %s70
      %p76 = scmp.eq.s32.totalorder %s15, 0
      %p77 = por %p75, %p76
      %p78 = scmp.ne.s32.totalorder %s67, %s70
      %p79 = scmp.eq.s32.totalorder %s20, 1
      %p80 = por %p78, %p79
      %p81 = scmp.ne.s32.totalorder %s70, %s71
      %p82 = scmp.eq.s32.totalorder %s20, 0
      %p83 = por %p81, %p82
      %p84 = scmp.ne.s32.totalorder %s70, %s71
      %p85 = scmp.eq.s32.totalorder %s21, 1
      %p86 = por %p84, %p85
      %p88 = scmp.ne.s32.totalorder %s71, %s87
      %p89 = scmp.eq.s32.totalorder %s21, 0
      %p90 = por %p88, %p89
      %s91 = ssub.s32 %s23, %s30
      %p92 = scmp.eq.s32.totalorder %s91, 0
      %s94 = sadd.s32 %s93, 1
      %s95 = scalar_select %p92, %s93, %s94
      %p98 = pneg %p92
      %p99 = scmp.eq.s32.totalorder %s15, 1
      %p100 = por %p98, %p99
      %p101 = scmp.ne.s32.totalorder %s93, %s96
      %p102 = scmp.eq.s32.totalorder %s15, 0
      %p103 = por %p101, %p102
      %p104 = scmp.ne.s32.totalorder %s93, %s96
      %p105 = scmp.eq.s32.totalorder %s20, 1
      %p106 = por %p104, %p105
      %p107 = scmp.ne.s32.totalorder %s96, %s97
      %p108 = scmp.eq.s32.totalorder %s20, 0
      %p109 = por %p107, %p108
      %p110 = scmp.ne.s32.totalorder %s96, %s97
      %p111 = scmp.eq.s32.totalorder %s21, 1
      %p112 = por %p110, %p111
      %p114 = scmp.ne.s32.totalorder %s97, %s113
      %p115 = scmp.eq.s32.totalorder %s21, 0
      %p116 = por %p114, %p115
      %s117 = ssub.s32 %s22, %s34
      %p118 = scmp.eq.s32.totalorder %s117, 0
      %s120 = sadd.s32 %s119, 1
      %s121 = scalar_select %p118, %s119, %s120
      %p124 = pneg %p118
      %p125 = scmp.eq.s32.totalorder %s15, 1
      %p126 = por %p124, %p125
      %p127 = scmp.ne.s32.totalorder %s119, %s122
      %p128 = scmp.eq.s32.totalorder %s15, 0
      %p129 = por %p127, %p128
      %p130 = scmp.ne.s32.totalorder %s119, %s122
      %p131 = scmp.eq.s32.totalorder %s20, 1
      %p132 = por %p130, %p131
      %p133 = scmp.ne.s32.totalorder %s122, %s123
      %p134 = scmp.eq.s32.totalorder %s20, 0
      %p135 = por %p133, %p134
      %p136 = scmp.ne.s32.totalorder %s122, %s123
      %p137 = scmp.eq.s32.totalorder %s21, 1
      %p138 = por %p136, %p137
      %p140 = scmp.ne.s32.totalorder %s123, %s139
      %p141 = scmp.eq.s32.totalorder %s21, 0
      %p142 = por %p140, %p141
      %p143 = scmp.le.s32.totalorder 1, %s15
      %p144 = scmp.lt.s32.totalorder %s15, 3
      %p145 = pnand %p143, %p144
      %p146 = pneg %p145
      // Predicated region
      $region9: #{tpu_custom_call.1} parent=5 // pred_check
        _
      $region10: #{tpu_custom_call.1} parent=5 // pred_check_branch
        %148 = sbr.rel (%p145) target = $region12
      $region11: #{tpu_custom_call.1} parent=5 // pred_region
        %s149 = ssub.s32 %s15, 1
        // Predicated region
        $region13: #{tpu_custom_call.1} parent=11 // pred_check
          %p150 = pneg %p109
        $region14: #{tpu_custom_call.1} parent=11 // pred_check_branch
          %152 = sbr.rel (%p150) target = $region16
        $region15: #{tpu_custom_call.1} parent=11 // pred_region
          %s153 = smul.u32 4, %s25
          %155 = vsyncadd [#allocation6], 0
          %s156 = smul.addr %s153, 8
          %s157 = scalar_lea.hbm %s2, %s156
          %s158 = sshll.u32 %s157, 4
          %s159 = int_to_ptr.hbm [resolvable:$true] %s158
          %s160 = sshll.u32 [#allocation7], 4
          %s161 = int_to_ptr.vmem [resolvable:$true] %s160
          %166 = dma.hbm_to_vmem [thread:$0]  %s159, 512, %s161, [#allocation6], 128, 128, 8
        $region16: #{tpu_custom_call.1} parent=11 // pred_fallthru
          _
      $region12: #{tpu_custom_call.1} parent=5 // pred_fallthru
        _
      %p167 = scmp.lt.s32.totalorder %s15, 2
      // Predicated region
      $region17: #{tpu_custom_call.1} parent=5 // pred_check
        %p168 = pneg %p167
      $region18: #{tpu_custom_call.1} parent=5 // pred_check_branch
        %170 = sbr.rel (%p168) target = $region20
      $region19: #{tpu_custom_call.1} parent=5 // pred_region
        // Predicated region
        $region21: #{tpu_custom_call.1} parent=19 // pred_check
          %p171 = pneg %p49
        $region22: #{tpu_custom_call.1} parent=19 // pred_check_branch
          %173 = sbr.rel (%p171) target = $region24
        $region23: #{tpu_custom_call.1} parent=19 // pred_region
          %s174 = sand.u32 %s39, 1
          %s175 = scalar_lea.sflag [#allocation4], %s174
          %s176 = sand.u32 %s39, 1
          %s177 = smul.addr %s176, 32
          %s178 = scalar_lea.vmem [#allocation3], %s177
          %s179 = smul.u32 4, %s23
          %181 = vsyncadd %s175, 0
          %s182 = smul.addr %s22, 4
          %s183 = sadd.s32 %s179, %s182
          %s184 = smul.addr %s183, 8
          %s185 = scalar_lea.hbm %s0, %s184
          %s186 = sshll.u32 %s185, 4
          %s187 = int_to_ptr.hbm [resolvable:$true] %s186
          %s188 = sshll.u32 %s178, 4
          %s189 = int_to_ptr.vmem [resolvable:$true] %s188
          %194 = dma.hbm_to_vmem [thread:$0]  %s187, 512, %s189, %s175, 128, 128, 8
        $region24: #{tpu_custom_call.1} parent=19 // pred_fallthru
          _
        // Predicated region
        $region25: #{tpu_custom_call.1} parent=19 // pred_check
          %p195 = pneg %p77
        $region26: #{tpu_custom_call.1} parent=19 // pred_check_branch
          %197 = sbr.rel (%p195) target = $region28
        $region27: #{tpu_custom_call.1} parent=19 // pred_region
          %s198 = sand.u32 %s15, 1
          %s199 = scalar_lea.sflag [#allocation6], %s198
          %s200 = sand.u32 %s67, 1
          %s201 = smul.addr %s200, 32
          %s202 = scalar_lea.vmem [#allocation5], %s201
          %s203 = smul.u32 4, %s23
          %205 = vsyncadd %s199, 0
          %s206 = smul.addr %s22, 4
          %s207 = sadd.s32 %s203, %s206
          %s208 = smul.addr %s207, 8
          %s209 = scalar_lea.hbm %s1, %s208
          %s210 = sshll.u32 %s209, 4
          %s211 = int_to_ptr.hbm [resolvable:$true] %s210
          %s212 = sshll.u32 %s202, 4
          %s213 = int_to_ptr.vmem [resolvable:$true] %s212
          %218 = dma.hbm_to_vmem [thread:$0]  %s211, 512, %s213, %s199, 128, 128, 8
        $region28: #{tpu_custom_call.1} parent=19 // pred_fallthru
          _
      $region20: #{tpu_custom_call.1} parent=5 // pred_fallthru
        _
      %p219 = scmp.le.s32.totalorder 1, %s15
      %p220 = scmp.lt.s32.totalorder %s15, 3
      %p221 = pnand %p219, %p220
      %p222 = pneg %p221
      // Predicated region
      $region29: #{tpu_custom_call.1} parent=5 // pred_check
        _
      $region30: #{tpu_custom_call.1} parent=5 // pred_check_branch
        %224 = sbr.rel (%p221) target = $region32
      $region31: #{tpu_custom_call.1} parent=5 // pred_region
        %s225 = ssub.s32 %s15, 1
        %s226 = sand.u32 %s42, 1
        %s227 = scalar_lea.sflag [#allocation4], %s226
        %s228 = sand.u32 %s42, 1
        %s229 = smul.addr %s228, 32
        %s230 = scalar_lea.vmem [#allocation3], %s229
        // Predicated region
        $region33: #{tpu_custom_call.1} parent=31 // pred_check
          %p231 = pneg %p55
        $region34: #{tpu_custom_call.1} parent=31 // pred_check_branch
          %233 = sbr.rel (%p231) target = $region36
        $region35: #{tpu_custom_call.1} parent=31 // pred_region
          %235 = dma.done %s227, 512
        $region36: #{tpu_custom_call.1} parent=31 // pred_fallthru
          _
        %s236 = sand.u32 %s20, 1
        %s237 = scalar_lea.sflag [#allocation6], %s236
        %s238 = sand.u32 %s70, 1
        %s239 = smul.addr %s238, 32
        %s240 = scalar_lea.vmem [#allocation5], %s239
        // Predicated region
        $region37: #{tpu_custom_call.1} parent=31 // pred_check
          %p241 = pneg %p83
        $region38: #{tpu_custom_call.1} parent=31 // pred_check_branch
          %243 = sbr.rel (%p241) target = $region40
        $region39: #{tpu_custom_call.1} parent=31 // pred_region
          %245 = dma.done %s237, 512
        $region40: #{tpu_custom_call.1} parent=31 // pred_fallthru
          _
        // Predicated region
        $region41: #{tpu_custom_call.1} parent=31 // pred_check
          %p246 = pneg %p109
        $region42: #{tpu_custom_call.1} parent=31 // pred_check_branch
          %248 = sbr.rel (%p246) target = $region44
        $region43: #{tpu_custom_call.1} parent=31 // pred_region
          %250 = dma.done [#allocation6], 512
        $region44: #{tpu_custom_call.1} parent=31 // pred_fallthru
          _
        %s251 = sand.u32 %s42, 1
        %s252 = scalar_lea.sflag [#allocation4], %s251
        %s253 = sand.u32 %s42, 1
        %s254 = smul.addr %s253, 32
        %s255 = scalar_lea.vmem [#allocation3], %s254
        %p256 = pneg %p55
        %p257 = pneg %p52
        %s258 = sand.u32 %s20, 1
        %s259 = scalar_lea.sflag [#allocation6], %s258
        %s260 = sand.u32 %s70, 1
        %s261 = smul.addr %s260, 32
        %s262 = scalar_lea.vmem [#allocation5], %s261
        %p263 = pneg %p83
        %p264 = pneg %p80
        %p265 = pneg %p109
        %p266 = pneg %p106
        %p267 = pneg %p135
        %p268 = pneg %p132
        %p269 = scmp.lt.s32.totalorder %s24, 1
        %s270 = scalar_select %p269, %s24, 1
        %s271 = scalar_lea.vmem %s3, %s270
        %s272 = smul.u32 4, %s25
        %s273 = smul.u32 4, %s25
        %s274 = smul.u32 4, %s25
        %p275 = scmp.lt.s32.totalorder %s24, 1
        %s276 = scalar_select %p275, %s24, 1
        %s277 = scalar_lea.vmem %s3, %s276
        %p278 = scmp.eq.s32.totalorder %s25, 0
        // Predicated region
        $region45: #{tpu_custom_call.1} parent=31 // pred_check
          %p279 = pneg %p278
        $region46: #{tpu_custom_call.1} parent=31 // pred_check_branch
          %281 = sbr.rel (%p279) target = $region48
        $region47: #{tpu_custom_call.1} parent=31 // pred_region
          %vm282 = vcmask 0
          %283 = vst.msk [vmem:[#allocation2] sm:$0x1] %vm282, 0.0
        $region48: #{tpu_custom_call.1} parent=31 // pred_fallthru
          _
        %v284 = vld [vmem:[%s230] sm:$0xff]
        %v285 = vld [vmem:[%s230 + $0x8] sm:$0xff]
        %v286 = vld [vmem:[%s230 + $0x10] sm:$0xff]
        %v287 = vld [vmem:[%s230 + $0x18] sm:$0xff]
        %v288 = vld [vmem:[%s240] sm:$0xff]
        %v289 = vld [vmem:[%s240 + $0x8] sm:$0xff]
        %v290 = vld [vmem:[%s240 + $0x10] sm:$0xff]
        %v291 = vld [vmem:[%s240 + $0x18] sm:$0xff]
        %v292 = vsub.f32 %v284, %v288
        %v293 = vsub.f32 %v285, %v289
        %v294 = vsub.f32 %v286, %v290
        %v295 = vsub.f32 %v287, %v291
        %v296 = vld [vmem:[#allocation2] sm:$0x1]
        %v297 = vmul.f32 %v292, %v292
        %v298 = vmul.f32 %v293, %v293
        %v299 = vmul.f32 %v294, %v294
        %v300 = vmul.f32 %v295, %v295
        %v301 = vld [vmem:[#allocation7] sm:$0xff]
        %v302 = vld [vmem:[#allocation7 + $0x8] sm:$0xff]
        %v303 = vld [vmem:[#allocation7 + $0x10] sm:$0xff]
        %v304 = vld [vmem:[#allocation7 + $0x18] sm:$0xff]
        %v305 = vmul.f32 %v297, %v301
        %v306 = vmul.f32 %v298, %v302
        %v307 = vmul.f32 %v299, %v303
        %v308 = vmul.f32 %v300, %v304
        %v309 = vadd.f32 %v305, %v306
        %v310 = vadd.f32 %v309, %v307
        %v311 = vadd.f32 %v310, %v308
        %312 = vadd.xlane.f32.xlu0 %v311
        %v313 = vpop.xlane.xlu0 %312
        %v314 = vrot.slane %v313, 4
        %v315 = vadd.f32 %v313, %v314
        %v316 = vrot.slane %v315, 2
        %v317 = vadd.f32 %v315, %v316
        %v318 = vrot.slane %v317, 1
        %v319 = vadd.f32 %v317, %v318
        %s320 = vtos %v319
        %v321 = vstv %s320
        %v322 = vadd.f32 %v296, %v321
        %vm323 = vcmask 0
        %324 = vst.msk [vmem:[#allocation2] sm:$0x1] %vm323, %v322
        // Predicated region
        $region49: #{tpu_custom_call.1} parent=31 // pred_check
          %p325 = pneg %p278
        $region50: #{tpu_custom_call.1} parent=31 // pred_check_branch
          %327 = sbr.rel (%p325) target = $region52
        $region51: #{tpu_custom_call.1} parent=31 // pred_region
          %v328 = vld [vmem:[#allocation2] sm:$0x1]
          %329 = vst.msk [vmem:[%s277] sm:$0x1] %vm323, %v328
        $region52: #{tpu_custom_call.1} parent=31 // pred_fallthru
          _
        %p330 = scmp.lt.s32.totalorder %s24, 1
        %s331 = scalar_select %p330, %s24, 1
        %s332 = scalar_lea.vmem %s3, %s331
        // Predicated region
        $region53: #{tpu_custom_call.1} parent=31 // pred_check
          %p333 = pneg %p132
        $region54: #{tpu_custom_call.1} parent=31 // pred_check_branch
          %335 = sbr.rel (%p333) target = $region56
        $region55: #{tpu_custom_call.1} parent=31 // pred_region
          _
        $region56: #{tpu_custom_call.1} parent=31 // pred_fallthru
          _
      $region32: #{tpu_custom_call.1} parent=5 // pred_fallthru
        _
      %p336 = scmp.le.s32.totalorder 2, %s15
      // Predicated region
      $region57: #{tpu_custom_call.1} parent=5 // pred_check
        %p337 = pneg %p336
      $region58: #{tpu_custom_call.1} parent=5 // pred_check_branch
        %339 = sbr.rel (%p337) target = $region60
      $region59: #{tpu_custom_call.1} parent=5 // pred_region
        %s340 = ssub.s32 %s15, 2
        // Predicated region
        $region61: #{tpu_custom_call.1} parent=59 // pred_check
          %p341 = pneg %p138
        $region62: #{tpu_custom_call.1} parent=59 // pred_check_branch
          %343 = sbr.rel (%p341) target = $region64
        $region63: #{tpu_custom_call.1} parent=59 // pred_region
          %p344 = scmp.lt.s32.totalorder %s26, 1
          %s345 = scalar_select %p344, %s26, 1
          %s346 = scalar_lea.vmem %s3, %s345
        $region64: #{tpu_custom_call.1} parent=59 // pred_fallthru
          _
      $region60: #{tpu_custom_call.1} parent=5 // pred_fallthru
        _
    $region6: #{tpu_custom_call.1} parent=1 // loop_footer
      %s19 = sadd.s32 1, %s15
    $region7: #{tpu_custom_call.1} parent=1 // loop_footer_branch
      %14 = sbr.rel target = $region3
    $region8: #{tpu_custom_call.1} parent=1 // loop_exit
      _
    %347 = vsyncpa [#allocation4], 1
    %s348 = scalar_lea.sflag [#allocation4], 1
    %349 = vsyncpa %s348, 1
    %350 = vsyncpa [#allocation6], 1
    %s351 = scalar_lea.sflag [#allocation6], 1
    %352 = vsyncpa %s351, 1

</llo_original>
